<compile_context>
chip_gen: v6e
topology: v6e:2x2x1
jax: 0.10.0
libtpu: 0.0.40
codegen_flags: <defaults>
</compile_context>

<pallas_src>
from functools import partial

import jax
import jax.numpy as jnp
from jax.experimental import pallas as pl
from jax.experimental.pallas import tpu as pltpu


def _round_up(x, m):
    return ((x + m - 1) // m) * m


def _vmem_capacity_bytes():
    # Trace-time hardware query; conservative default if unavailable.
    try:
        return int(pltpu.get_tpu_info().vmem_capacity_bytes)
    except Exception:
        return 64 * 1024 * 1024  # v7x per-TC physical VMEM (smallest case)


_MAX_ONEHOT_ROWS = 4096           # one-hot-matmul gather only for modest tables
_ONEHOT_BYTES_CAP = 8 * 1024 * 1024   # per-table cap for in-kernel one-hot buffer


# ----------------------------------------------------------------------------
# Fused kernel: one-hot MXU gather + lane-dense dot/reduce + sigmoid.
# ----------------------------------------------------------------------------
def _mf_fused_kernel(idx_ref, u_tab_ref, v_tab_ref, o_ref):
    # idx_ref   : (2, TB) int32  -- row 0 = user ids, row 1 = item ids
    # u_tab_ref : (Ep, NUp) f32  -- transposed user table, rows E..E+1 = [bias_u, 1]
    # v_tab_ref : (Ep, NVp) f32  -- transposed item table, rows E..E+1 = [1, bias_v]
    # o_ref     : (1, TB)  f32   -- lane-dense output slab
    idx = idx_ref[...]
    u_idx = idx[0:1, :]                                   # (1, TB)
    v_idx = idx[1:2, :]                                   # (1, TB)
    nu = u_tab_ref.shape[1]
    nv = v_tab_ref.shape[1]
    tb = o_ref.shape[1]

    # One-hot gathers on the MXU (instead of serialized dynamic slices).
    onehot_u = jnp.where(
        jax.lax.broadcasted_iota(jnp.int32, (nu, tb), 0) == u_idx, 1.0, 0.0)
    onehot_v = jnp.where(
        jax.lax.broadcasted_iota(jnp.int32, (nv, tb), 0) == v_idx, 1.0, 0.0)
    u_t = jnp.dot(u_tab_ref[...], onehot_u,
                  preferred_element_type=jnp.float32)     # (Ep, TB)
    v_t = jnp.dot(v_tab_ref[...], onehot_v,
                  preferred_element_type=jnp.float32)     # (Ep, TB)

    # Lane-dense VPU multiply + cheap sublane reduce; biases ride in the two
    # augmented table rows (bias_u*1 + 1*bias_v).
    dot = jnp.sum(u_t * v_t, axis=0, keepdims=True)       # (1, TB)
    o_ref[...] = jax.nn.sigmoid(dot)                      # EUP


def _mf_forward_fused(u_idx, v_idx, user_emb, item_emb, user_bias, item_bias,
                      block_b):
    B = u_idx.shape[0]
    n_users, E = user_emb.shape
    n_items = item_emb.shape[0]

    # --- augmented, transposed, lane-dense tables ---------------------------
    ep = _round_up(E + 2, 8)
    nu_p = _round_up(n_users, 128)
    nv_p = _round_up(n_items, 128)

    u_aug = jnp.concatenate(
        [user_emb.astype(jnp.float32), user_bias.astype(jnp.float32),
         jnp.ones((n_users, 1), jnp.float32)], axis=1)          # (NU, E+2)
    v_aug = jnp.concatenate(
        [item_emb.astype(jnp.float32), jnp.ones((n_items, 1), jnp.float32),
         item_bias.astype(jnp.float32)], axis=1)                # (NV, E+2)
    u_tab = jnp.zeros((ep, nu_p), jnp.float32).at[:E + 2, :n_users].set(u_aug.T)
    v_tab = jnp.zeros((ep, nv_p), jnp.float32).at[:E + 2, :n_items].set(v_aug.T)

    # --- batch tiling (lane axis) -------------------------------------------
    # Cap TB so the in-kernel (N, TB) one-hot intermediates stay bounded.
    tb_cap = max(128, (_ONEHOT_BYTES_CAP // (4 * max(nu_p, nv_p))) // 128 * 128)
    tb = min(_round_up(block_b, 128), _round_up(B, 128), tb_cap)
    bp = _round_up(B, tb)
    n_tiles = bp // tb
    pad = bp - B

    idx = jnp.stack([jnp.pad(u_idx.astype(jnp.int32), (0, pad)),
                     jnp.pad(v_idx.astype(jnp.int32), (0, pad))], axis=0)  # (2,bp)

    # --- VMEM budget: lane-padding aware, generation aware ------------------
    cap = _vmem_capacity_bytes()
    # TODO(synk): single-buffer the resident tables (pipeline_mode=pl.Buffered(1)
    # or a one-time scratch sync_copy) once validated on the local build; until
    # then budget for the default 2-deep pipeline.
    table_vmem = 2 * ep * (nu_p + nv_p) * 4
    onehot_vmem = (nu_p + nv_p) * tb * 4
    work_vmem = 4 * ep * tb * 4 + 2 * (2 * tb * 4) + 2 * (tb * 4)
    est = table_vmem + onehot_vmem + work_vmem + (2 << 20)
    vmem_limit = int(min(max(2 * est, 32 * 1024 * 1024), int(0.9 * cap)))

    cost = pl.CostEstimate(
        flops=int(2 * (nu_p + nv_p) * ep * bp + 3 * ep * bp),
        transcendentals=int(bp),
        bytes_accessed=int(ep * (nu_p + nv_p) * 4 + 2 * bp * 4 + bp * 4),
    )

    out = pl.pallas_call(
        _mf_fused_kernel,
        out_shape=jax.ShapeDtypeStruct((1, bp), jnp.float32),
        grid=(n_tiles,),
        in_specs=[
            pl.BlockSpec((2, tb), lambda i: (0, i)),       # packed u/v indices
            pl.BlockSpec((ep, nu_p), lambda i: (0, 0)),    # resident user table
            pl.BlockSpec((ep, nv_p), lambda i: (0, 0)),    # resident item table
        ],
        out_specs=pl.BlockSpec((1, tb), lambda i: (0, i)),
        compiler_params=pltpu.CompilerParams(
            dimension_semantics=("parallel",),
            vmem_limit_bytes=vmem_limit,
        ),
        cost_estimate=cost,
    )(idx, u_tab, v_tab)

    return out[0, :B]


# ----------------------------------------------------------------------------
# Fallback kernel: wrapper-side gather, lane-dense (E+2, TB) slabs.
# ----------------------------------------------------------------------------
def _mf_tiled_kernel(ut_ref, vt_ref, o_ref):
    # ut_ref / vt_ref : (Ep, TB) f32, biases fused as two extra rows.
    dot = jnp.sum(ut_ref[...] * vt_ref[...], axis=0, keepdims=True)   # (1, TB)
    o_ref[...] = jax.nn.sigmoid(dot)


def _mf_forward_unfused(u_idx, v_idx, user_emb, item_emb, user_bias, item_bias,
                        block_b):
    B = u_idx.shape[0]
    E = user_emb.shape[1]
    ep = _round_up(E + 2, 8)
    tb = min(_round_up(block_b, 128), _round_up(B, 128))
    bp = _round_up(B, tb)
    pad = bp - B

    u_pad = jnp.pad(u_idx.astype(jnp.int32), (0, pad))
    v_pad = jnp.pad(v_idx.astype(jnp.int32), (0, pad))

    # Gather transposed (batch on the lane axis) and fuse the biases as rows.
    ut = jnp.zeros((ep, bp), jnp.float32)
    ut = ut.at[:E, :].set(user_emb.astype(jnp.float32)[u_pad].T)
    ut = ut.at[E, :].set(user_bias.astype(jnp.float32)[u_pad, 0])
    ut = ut.at[E + 1, :].set(1.0)
    vt = jnp.zeros((ep, bp), jnp.float32)
    vt = vt.at[:E, :].set(item_emb.astype(jnp.float32)[v_pad].T)
    vt = vt.at[E, :].set(1.0)
    vt = vt.at[E + 1, :].set(item_bias.astype(jnp.float32)[v_pad, 0])

    out = pl.pallas_call(
        _mf_tiled_kernel,
        out_shape=jax.ShapeDtypeStruct((1, bp), jnp.float32),
        grid=(bp // tb,),
        in_specs=[
            pl.BlockSpec((ep, tb), lambda i: (0, i)),
            pl.BlockSpec((ep, tb), lambda i: (0, i)),
        ],
        out_specs=pl.BlockSpec((1, tb), lambda i: (0, i)),
        compiler_params=pltpu.CompilerParams(dimension_semantics=("parallel",)),
    )(ut, vt)
    return out[0, :B]


# ----------------------------------------------------------------------------
# Public forward (equivalent of MF.forward(u, v)); returns shape [B] float32.
# ----------------------------------------------------------------------------
@partial(jax.jit, static_argnames=("block_b",))
def mf_forward(u_idx, v_idx, user_emb, item_emb, user_bias, item_bias,
               block_b=2048):
    n_users, E = user_emb.shape
    n_items = item_emb.shape[0]
    ep = _round_up(E + 2, 8)
    nu_p = _round_up(n_users, 128)
    nv_p = _round_up(n_items, 128)
    cap = _vmem_capacity_bytes()

    # Static (trace-time) path choice: fused one-hot gather only when both
    # tables are modest and comfortably fit resident in VMEM.
    table_vmem = 2 * ep * (nu_p + nv_p) * 4
    fused_ok = (max(n_users, n_items) <= _MAX_ONEHOT_ROWS
                and table_vmem <= cap // 2)
    if fused_ok:
        return _mf_forward_fused(u_idx, v_idx, user_emb, item_emb,
                                 user_bias, item_bias, block_b)
    # TODO(synk): large-table path -- keep tables in memory_space=pl.ANY,
    # scalar-prefetch the indices (PrefetchScalarGridSpec) and DMA-gather the
    # touched rows per tile with double-buffered pltpu.make_async_copy.
    return _mf_forward_unfused(u_idx, v_idx, user_emb, item_emb,
                               user_bias, item_bias, block_b)


def init_params(num_users, num_items, emb_size, key):
    """Deterministic synthetic parameter init matching the module's ranges."""
    k1, k2, k3, k4 = jax.random.split(key, 4)
    user_emb = jax.random.uniform(k1, (num_users, emb_size), jnp.float32, 0.0, 0.05)
    item_emb = jax.random.uniform(k2, (num_items, emb_size), jnp.float32, 0.0, 0.05)
    user_bias = jax.random.uniform(k3, (num_users, 1), jnp.float32, -0.01, 0.01)
    item_bias = jax.random.uniform(k4, (num_items, 1), jnp.float32, -0.01, 0.01)
    # NOTE: bf16 table storage halves resident VMEM / HBM fill (the one-hot
    # matmul takes bf16 natively); kept f32 here to keep the reference tight.
    return user_emb, item_emb, user_bias, item_bias


if __name__ == "__main__":
    num_users, num_items, emb_size = 64, 96, 32

    key = jax.random.PRNGKey(0)
    kp, ku1, kv1, ku2, kv2 = jax.random.split(key, 5)
    user_emb, item_emb, user_bias, item_bias = init_params(
        num_users, num_items, emb_size, kp)

    def reference(u, v):
        U = user_emb[u]
        V = item_emb[v]
        return jax.nn.sigmoid((U * V).sum(1) + user_bias[u, 0] + item_bias[v, 0])

    # Tolerance note: the one-hot gather runs on the MXU; if the build lowers
    # f32 dots via bf16 passes the gathered values carry bf16-level rounding,
    # so we allow a few e-4 (exact-f32 builds are ~1e-6 off).
    # Case 1: small batch (single padded tile), fused one-hot-MXU path.
    b1 = 8
    u1 = jax.random.randint(ku1, (b1,), 0, num_users, dtype=jnp.int32)
    v1 = jax.random.randint(kv1, (b1,), 0, num_items, dtype=jnp.int32)
    out1 = jax.block_until_ready(
        mf_forward(u1, v1, user_emb, item_emb, user_bias, item_bias))
    assert out1.shape == (b1,)
    assert jnp.allclose(out1, reference(u1, v1), atol=5e-4, rtol=5e-4), out1

    # Case 2: multi-tile batch with padding (exercises the parallel grid).
    b2 = 333
    u2 = jax.random.randint(ku2, (b2,), 0, num_users, dtype=jnp.int32)
    v2 = jax.random.randint(kv2, (b2,), 0, num_items, dtype=jnp.int32)
    out2 = jax.block_until_ready(
        mf_forward(u2, v2, user_emb, item_emb, user_bias, item_bias, block_b=128))
    assert out2.shape == (b2,)
    assert jnp.allclose(out2, reference(u2, v2), atol=5e-4, rtol=5e-4), out2

    # Case 3: exercise the lane-dense wrapper-gather fallback path directly.
    out3 = jax.block_until_ready(
        _mf_forward_unfused(u2, v2, user_emb, item_emb, user_bias, item_bias, 128))
    assert out3.shape == (b2,)
    assert jnp.allclose(out3, reference(u2, v2), atol=1e-5, rtol=1e-5), out3

    print("KERNEL_OK")
</pallas_src>

<mosaic_0001>
module attributes {stable_mosaic.version = 11 : i64} {
  func.func @_mf_fused_kernel(%arg0: i32, %arg1: memref<2x128xi32, #tpu.memory_space<vmem>>, %arg2: memref<40x128xf32, #tpu.memory_space<vmem>>, %arg3: memref<40x128xf32, #tpu.memory_space<vmem>>, %arg4: memref<1x128xf32, #tpu.memory_space<vmem>>) attributes {dimension_semantics = [#tpu.dimension_semantics<parallel>], iteration_bounds = array<i64: 1>, scalar_prefetch = 0 : i64, scratch_operands = 0 : i64, tpu.core_type = #tpu.core_type<tc>, window_params = [{transform_indices = @transform_0, window_bounds = array<i64: 2, 128>}, {pipeline_mode = #tpu.pipeline_mode<synchronous>, transform_indices = @transform_1, window_bounds = array<i64: 40, 128>}, {pipeline_mode = #tpu.pipeline_mode<synchronous>, transform_indices = @transform_2, window_bounds = array<i64: 40, 128>}, {transform_indices = @transform_3, window_bounds = array<i64: 1, 128>}]} {
    %c0 = arith.constant 0 : index
    %c0_0 = arith.constant 0 : index
    %0 = vector.load %arg1[%c0, %c0_0] : memref<2x128xi32, #tpu.memory_space<vmem>>, vector<2x128xi32>
    %1 = vector.extract_strided_slice %0 {offsets = [0, 0], sizes = [1, 128], strides = [1, 1]} : vector<2x128xi32> to vector<1x128xi32>
    %2 = vector.extract_strided_slice %0 {offsets = [1, 0], sizes = [1, 128], strides = [1, 1]} : vector<2x128xi32> to vector<1x128xi32>
    %3 = tpu.iota {dimensions = array<i32: 0>} : vector<128x128xi32>
    %4 = vector.broadcast %1 : vector<1x128xi32> to vector<128x128xi32>
    %5 = arith.cmpi eq, %3, %4 : vector<128x128xi32>
    %cst = arith.constant 1.000000e+00 : f32
    %cst_1 = arith.constant 0.000000e+00 : f32
    %6 = vector.broadcast %cst : f32 to vector<128x128xf32>
    %7 = vector.broadcast %cst_1 : f32 to vector<128x128xf32>
    %8 = arith.select %5, %6, %7 : vector<128x128xi1>, vector<128x128xf32>
    %9 = tpu.iota {dimensions = array<i32: 0>} : vector<128x128xi32>
    %10 = vector.broadcast %2 : vector<1x128xi32> to vector<128x128xi32>
    %11 = arith.cmpi eq, %9, %10 : vector<128x128xi32>
    %cst_2 = arith.constant 1.000000e+00 : f32
    %cst_3 = arith.constant 0.000000e+00 : f32
    %12 = vector.broadcast %cst_2 : f32 to vector<128x128xf32>
    %13 = vector.broadcast %cst_3 : f32 to vector<128x128xf32>
    %14 = arith.select %11, %12, %13 : vector<128x128xi1>, vector<128x128xf32>
    %c0_4 = arith.constant 0 : index
    %c0_5 = arith.constant 0 : index
    %15 = vector.load %arg2[%c0_4, %c0_5] : memref<40x128xf32, #tpu.memory_space<vmem>>, vector<40x128xf32>
    %cst_6 = arith.constant dense<0.000000e+00> : vector<40x128xf32>
    %16 = tpu.matmul %15, %8, %cst_6 {dimension_numbers = #tpu.dot_dimension_numbers<[1], [0], [0], [1], [0, 0, 1, 1], [], []>} : vector<40x128xf32>, vector<128x128xf32>, vector<40x128xf32> -> vector<40x128xf32>
    %c0_7 = arith.constant 0 : index
    %c0_8 = arith.constant 0 : index
    %17 = vector.load %arg3[%c0_7, %c0_8] : memref<40x128xf32, #tpu.memory_space<vmem>>, vector<40x128xf32>
    %cst_9 = arith.constant dense<0.000000e+00> : vector<40x128xf32>
    %18 = tpu.matmul %17, %14, %cst_9 {dimension_numbers = #tpu.dot_dimension_numbers<[1], [0], [0], [1], [0, 0, 1, 1], [], []>} : vector<40x128xf32>, vector<128x128xf32>, vector<40x128xf32> -> vector<40x128xf32>
    %19 = arith.mulf %16, %18 : vector<40x128xf32>
    %cst_10 = arith.constant dense<0.000000e+00> : vector<128xf32>
    %20 = vector.multi_reduction <add>, %19, %cst_10 [0] : vector<40x128xf32> to vector<128xf32>
    %21 = vector.shape_cast %20 : vector<128xf32> to vector<1x128xf32>
    %22 = arith.negf %21 : vector<1x128xf32>
    %23 = math.exp %22 : vector<1x128xf32>
    %cst_11 = arith.constant 1.000000e+00 : f32
    %24 = vector.broadcast %cst_11 : f32 to vector<1x128xf32>
    %25 = arith.addf %24, %23 : vector<1x128xf32>
    %26 = arith.divf %24, %25 : vector<1x128xf32>
    %c0_12 = arith.constant 0 : index
    %c0_13 = arith.constant 0 : index
    %27 = vector.load %arg4[%c0_12, %c0_13] : memref<1x128xf32, #tpu.memory_space<vmem>>, vector<1x128xf32>
    tpu.vector_store %arg4[%c0_12, %c0_13], %26 {strides = array<i32>} : memref<1x128xf32, #tpu.memory_space<vmem>>, vector<1x128xf32>,
    return
  }
  func.func @transform_0(%arg0: i32) -> (i32, i32) {
    %c0_i32 = arith.constant 0 : i32
    %c0_i32_0 = arith.constant 0 : i32
    return %c0_i32, %arg0 : i32, i32
  }
  func.func @transform_1(%arg0: i32) -> (i32, i32) {
    %c0_i32 = arith.constant 0 : i32
    %c0_i32_0 = arith.constant 0 : i32
    %c0_i32_1 = arith.constant 0 : i32
    return %c0_i32, %c0_i32_0 : i32, i32
  }
  func.func @transform_2(%arg0: i32) -> (i32, i32) {
    %c0_i32 = arith.constant 0 : i32
    %c0_i32_0 = arith.constant 0 : i32
    %c0_i32_1 = arith.constant 0 : i32
    return %c0_i32, %c0_i32_0 : i32, i32
  }
  func.func @transform_3(%arg0: i32) -> (i32, i32) {
    %c0_i32 = arith.constant 0 : i32
    %c0_i32_0 = arith.constant 0 : i32
    return %c0_i32, %arg0 : i32, i32
  }
}

</mosaic_0001>

<llo_original>
// kernel: mf_forward.1
$region0: #{mf_forward.1}
  #allocation0 [shape = 'u32[]', space=smem, size = 0x4, offset = 0x4, fixed_abs, tag = 'smem constant byte address 0x4 - core index']
  #allocation1 [shape = 'u32[144,128]{1,0:T(1,128)}', space=vmem, size = 0x12000, scoped, tag = 'internal scratch']
  %s0 = inlined_call_operand.vmem [shape: s32[2,128], index: 0, kind: input, shape index: {}]
  %s1 = inlined_call_operand.vmem [shape: f32[40,128], index: 1, kind: input, shape index: {}]
  %s2 = inlined_call_operand.vmem [shape: f32[40,128], index: 2, kind: input, shape index: {}]
  %s3 = inlined_call_operand.vmem [shape: f32[1,128], index: 3, kind: output, shape index: {}]
  %s4 = sld [smem:[#allocation0]]
  $region22: #{mf_forward.1} parent=0
    _
  %s6 = ssub.s32 1, %s4
  %s7 = scalar_select 0, %s6, %s4
  // Predicated region
  $region2: #{mf_forward.1} parent=0 // pred_check
    _
  $region3: #{mf_forward.1} parent=0 // pred_check_branch
    %9 = sbr.rel (0) target = $region5
  $region4: #{mf_forward.1} parent=0 // pred_region
    _
  $region5: #{mf_forward.1} parent=0 // pred_fallthru
    _
  // Predicated region
  $region6: #{mf_forward.1} parent=0 // pred_check
    _
  $region7: #{mf_forward.1} parent=0 // pred_check_branch
    %11 = sbr.rel (0) target = $region9
  $region8: #{mf_forward.1} parent=0 // pred_region
    _
  $region9: #{mf_forward.1} parent=0 // pred_fallthru
    _
  // Predicated region
  $region10: #{mf_forward.1} parent=0 // pred_check
    _
  $region11: #{mf_forward.1} parent=0 // pred_check_branch
    %13 = sbr.rel (0) target = $region13
  $region12: #{mf_forward.1} parent=0 // pred_region
    _
  $region13: #{mf_forward.1} parent=0 // pred_fallthru
    _
  %v14 = vld [vmem:[%s0] sm:$0x3]
  %v15 = vlaneseq
  %v16 = vshrl.u32 %v15, 7
  %v17 = vadd.s32 %v16, 8
  %v18 = vadd.s32 %v16, 16
  %v19 = vadd.s32 %v16, 24
  %v20 = vadd.s32 %v16, 32
  %v21 = vadd.s32 %v16, 40
  %v22 = vadd.s32 %v16, 48
  %v23 = vadd.s32 %v16, 56
  %v24 = vadd.s32 %v16, 64
  %v25 = vadd.s32 %v16, 72
  %v26 = vadd.s32 %v16, 80
  %v27 = vadd.s32 %v16, 88
  %v28 = vadd.s32 %v16, 96
  %v29 = vadd.s32 %v16, 104
  %v30 = vadd.s32 %v16, 112
  %v31 = vadd.s32 %v16, 120
  %v32 = vlaneseq
  %v33 = vshrl.u32 %v32, 7
  %v34 = vsub.s32 0, %v33
  %v35 = vrot.slane %v14, %v34
  %vm36 = vcmp.eq.s32.totalorder %v16, %v35
  %vm37 = vcmp.eq.s32.totalorder %v17, %v35
  %vm38 = vcmp.eq.s32.totalorder %v18, %v35
  %vm39 = vcmp.eq.s32.totalorder %v19, %v35
  %vm40 = vcmp.eq.s32.totalorder %v20, %v35
  %vm41 = vcmp.eq.s32.totalorder %v21, %v35
  %vm42 = vcmp.eq.s32.totalorder %v22, %v35
  %vm43 = vcmp.eq.s32.totalorder %v23, %v35
  %vm44 = vcmp.eq.s32.totalorder %v24, %v35
  %vm45 = vcmp.eq.s32.totalorder %v25, %v35
  %vm46 = vcmp.eq.s32.totalorder %v26, %v35
  %vm47 = vcmp.eq.s32.totalorder %v27, %v35
  %vm48 = vcmp.eq.s32.totalorder %v28, %v35
  %vm49 = vcmp.eq.s32.totalorder %v29, %v35
  %vm50 = vcmp.eq.s32.totalorder %v30, %v35
  %vm51 = vcmp.eq.s32.totalorder %v31, %v35
  %v52 = vsel %vm36, 1.0, 0.0
  %v53 = vsel %vm37, 1.0, 0.0
  %v54 = vsel %vm38, 1.0, 0.0
  %v55 = vsel %vm39, 1.0, 0.0
  %v56 = vsel %vm40, 1.0, 0.0
  %v57 = vsel %vm41, 1.0, 0.0
  %v58 = vsel %vm42, 1.0, 0.0
  %v59 = vsel %vm43, 1.0, 0.0
  %v60 = vsel %vm44, 1.0, 0.0
  %v61 = vsel %vm45, 1.0, 0.0
  %v62 = vsel %vm46, 1.0, 0.0
  %v63 = vsel %vm47, 1.0, 0.0
  %v64 = vsel %vm48, 1.0, 0.0
  %v65 = vsel %vm49, 1.0, 0.0
  %v66 = vsel %vm50, 1.0, 0.0
  %v67 = vsel %vm51, 1.0, 0.0
  %v68 = vlaneseq
  %v69 = vshrl.u32 %v68, 7
  %v70 = vsub.s32 1, %v69
  %v71 = vrot.slane %v14, %v70
  %vm72 = vcmp.eq.s32.totalorder %v16, %v71
  %vm73 = vcmp.eq.s32.totalorder %v17, %v71
  %vm74 = vcmp.eq.s32.totalorder %v18, %v71
  %vm75 = vcmp.eq.s32.totalorder %v19, %v71
  %vm76 = vcmp.eq.s32.totalorder %v20, %v71
  %vm77 = vcmp.eq.s32.totalorder %v21, %v71
  %vm78 = vcmp.eq.s32.totalorder %v22, %v71
  %vm79 = vcmp.eq.s32.totalorder %v23, %v71
  %vm80 = vcmp.eq.s32.totalorder %v24, %v71
  %vm81 = vcmp.eq.s32.totalorder %v25, %v71
  %vm82 = vcmp.eq.s32.totalorder %v26, %v71
  %vm83 = vcmp.eq.s32.totalorder %v27, %v71
  %vm84 = vcmp.eq.s32.totalorder %v28, %v71
  %vm85 = vcmp.eq.s32.totalorder %v29, %v71
  %vm86 = vcmp.eq.s32.totalorder %v30, %v71
  %vm87 = vcmp.eq.s32.totalorder %v31, %v71
  %v88 = vsel %vm72, 1.0, 0.0
  %v89 = vsel %vm73, 1.0, 0.0
  %v90 = vsel %vm74, 1.0, 0.0
  %v91 = vsel %vm75, 1.0, 0.0
  %v92 = vsel %vm76, 1.0, 0.0
  %v93 = vsel %vm77, 1.0, 0.0
  %v94 = vsel %vm78, 1.0, 0.0
  %v95 = vsel %vm79, 1.0, 0.0
  %v96 = vsel %vm80, 1.0, 0.0
  %v97 = vsel %vm81, 1.0, 0.0
  %v98 = vsel %vm82, 1.0, 0.0
  %v99 = vsel %vm83, 1.0, 0.0
  %v100 = vsel %vm84, 1.0, 0.0
  %v101 = vsel %vm85, 1.0, 0.0
  %v102 = vsel %vm86, 1.0, 0.0
  %v103 = vsel %vm87, 1.0, 0.0
  %v104 = vld [vmem:[%s1] sm:$0xff]
  %v105 = vld [vmem:[%s1 + $0x8] sm:$0xff]
  %v106 = vld [vmem:[%s1 + $0x10] sm:$0xff]
  %v107 = vld [vmem:[%s1 + $0x18] sm:$0xff]
  %v108 = vld [vmem:[%s1 + $0x20] sm:$0xff]
  %109 = vmatprep.subr.mxu0 0.0
  %110 = vmatpush1.msra.mxu0 %v67
  %111 = vmatprep.subr.mxu0 0.0
  %112 = vmatpush1.msra.mxu0 %v66
  %113 = vmatprep.subr.mxu0 0.0
  %114 = vmatpush1.msra.mxu0 %v65
  %115 = vmatprep.subr.mxu0 0.0
  %116 = vmatpush1.msra.mxu0 %v64
  %117 = vmatprep.subr.mxu0 0.0
  %118 = vmatpush1.msra.mxu0 %v63
  %119 = vmatprep.subr.mxu0 0.0
  %120 = vmatpush1.msra.mxu0 %v62
  %121 = vmatprep.subr.mxu0 0.0
  %122 = vmatpush1.msra.mxu0 %v61
  %123 = vmatprep.subr.mxu0 0.0
  %124 = vmatpush1.msra.mxu0 %v60
  %125 = vmatprep.subr.mxu0 0.0
  %126 = vmatpush1.msra.mxu0 %v59
  %127 = vmatprep.subr.mxu0 0.0
  %128 = vmatpush1.msra.mxu0 %v58
  %129 = vmatprep.subr.mxu0 0.0
  %130 = vmatpush1.msra.mxu0 %v57
  %131 = vmatprep.subr.mxu0 0.0
  %132 = vmatpush1.msra.mxu0 %v56
  %133 = vmatprep.subr.mxu0 0.0
  %134 = vmatpush1.msra.mxu0 %v55
  %135 = vmatprep.subr.mxu0 0.0
  %136 = vmatpush1.msra.mxu0 %v54
  %137 = vmatprep.subr.mxu0 0.0
  %138 = vmatpush1.msra.mxu0 %v53
  %139 = vmatprep.subr.mxu0 0.0
  %140 = vmatpush1.msra.mxu0 %v52
  %141 = vmatprep.subr.mxu0 0.0
  %142 = vmatpush2.msra.mxu0 0.0
  %143 = vmatprep.subr.mxu0 0.0
  %144 = vmatpush2.msra.mxu0 0.0
  %145 = vmatprep.subr.mxu0 0.0
  %146 = vmatpush2.msra.mxu0 0.0
  %147 = vmatprep.subr.mxu0 0.0
  %148 = vmatpush2.msra.mxu0 0.0
  %149 = vmatprep.subr.mxu0 0.0
  %150 = vmatpush2.msra.mxu0 0.0
  %151 = vmatprep.subr.mxu0 0.0
  %152 = vmatpush2.msra.mxu0 0.0
  %153 = vmatprep.subr.mxu0 0.0
  %154 = vmatpush2.msra.mxu0 0.0
  %155 = vmatprep.subr.mxu0 0.0
  %156 = vmatpush2.msra.mxu0 0.0
  %157 = vmatprep.subr.mxu0 0.0
  %158 = vmatpush2.msra.mxu0 0.0
  %159 = vmatprep.subr.mxu0 0.0
  %160 = vmatpush2.msra.mxu0 0.0
  %161 = vmatprep.subr.mxu0 0.0
  %162 = vmatpush2.msra.mxu0 0.0
  %163 = vmatprep.subr.mxu0 0.0
  %164 = vmatpush2.msra.mxu0 0.0
  %165 = vmatprep.subr.mxu0 0.0
  %166 = vmatpush2.msra.mxu0 0.0
  %167 = vmatprep.subr.mxu0 0.0
  %168 = vmatpush2.msra.mxu0 0.0
  %169 = vmatprep.subr.mxu0 0.0
  %170 = vmatpush2.msra.mxu0 0.0
  %171 = vmatprep.subr.mxu0 0.0
  %172 = vmatpush2.msra.mxu0 0.0
  %173 = vmatprep.mubr.f32.mxu0 0.0
  %174 = vmatmul.mubr.f32.gmra.mxu0 %v104
  %v175 = vpop.f32.mrf.mxu0
  %v176 = vadd.f32 0.0, %v175
  %v177 = vpop.f32.mrf.mxu0
  %178 = vmatprep.mubr.f32.mxu0 0.0
  %179 = vmatmul.mubr.f32.gmra.mxu0 %v105
  %v180 = vpop.f32.mrf.mxu0
  %v181 = vadd.f32 0.0, %v180
  %v182 = vpop.f32.mrf.mxu0
  %183 = vmatprep.mubr.f32.mxu0 0.0
  %184 = vmatmul.mubr.f32.gmra.mxu0 %v106
  %v185 = vpop.f32.mrf.mxu0
  %v186 = vadd.f32 0.0, %v185
  %v187 = vpop.f32.mrf.mxu0
  %188 = vmatprep.mubr.f32.mxu0 0.0
  %189 = vmatmul.mubr.f32.gmra.mxu0 %v107
  %v190 = vpop.f32.mrf.mxu0
  %v191 = vadd.f32 0.0, %v190
  %v192 = vpop.f32.mrf.mxu0
  %193 = vmatprep.mubr.f32.mxu0 0.0
  %194 = vmatmul.mubr.f32.gmra.mxu0 %v108
  %v195 = vpop.f32.mrf.mxu0
  %v196 = vadd.f32 0.0, %v195
  %v197 = vpop.f32.mrf.mxu0
  %198 = vdwg.mxu0
  %v199 = vld [vmem:[%s2] sm:$0xff]
  %v200 = vld [vmem:[%s2 + $0x8] sm:$0xff]
  %v201 = vld [vmem:[%s2 + $0x10] sm:$0xff]
  %v202 = vld [vmem:[%s2 + $0x18] sm:$0xff]
  %v203 = vld [vmem:[%s2 + $0x20] sm:$0xff]
  %204 = vmatprep.subr.mxu0 0.0
  %205 = vmatpush1.msra.mxu0 %v103
  %206 = vmatprep.subr.mxu0 0.0
  %207 = vmatpush1.msra.mxu0 %v102
  %208 = vmatprep.subr.mxu0 0.0
  %209 = vmatpush1.msra.mxu0 %v101
  %210 = vmatprep.subr.mxu0 0.0
  %211 = vmatpush1.msra.mxu0 %v100
  %212 = vmatprep.subr.mxu0 0.0
  %213 = vmatpush1.msra.mxu0 %v99
  %214 = vmatprep.subr.mxu0 0.0
  %215 = vmatpush1.msra.mxu0 %v98
  %216 = vmatprep.subr.mxu0 0.0
  %217 = vmatpush1.msra.mxu0 %v97
  %218 = vmatprep.subr.mxu0 0.0
  %219 = vmatpush1.msra.mxu0 %v96
  %220 = vmatprep.subr.mxu0 0.0
  %221 = vmatpush1.msra.mxu0 %v95
  %222 = vmatprep.subr.mxu0 0.0
  %223 = vmatpush1.msra.mxu0 %v94
  %224 = vmatprep.subr.mxu0 0.0
  %225 = vmatpush1.msra.mxu0 %v93
  %226 = vmatprep.subr.mxu0 0.0
  %227 = vmatpush1.msra.mxu0 %v92
  %228 = vmatprep.subr.mxu0 0.0
  %229 = vmatpush1.msra.mxu0 %v91
  %230 = vmatprep.subr.mxu0 0.0
  %231 = vmatpush1.msra.mxu0 %v90
  %232 = vmatprep.subr.mxu0 0.0
  %233 = vmatpush1.msra.mxu0 %v89
  %234 = vmatprep.subr.mxu0 0.0
  %235 = vmatpush1.msra.mxu0 %v88
  %236 = vmatprep.subr.mxu0 0.0
  %237 = vmatpush2.msra.mxu0 0.0
  %238 = vmatprep.subr.mxu0 0.0
  %239 = vmatpush2.msra.mxu0 0.0
  %240 = vmatprep.subr.mxu0 0.0
  %241 = vmatpush2.msra.mxu0 0.0
  %242 = vmatprep.subr.mxu0 0.0
  %243 = vmatpush2.msra.mxu0 0.0
  %244 = vmatprep.subr.mxu0 0.0
  %245 = vmatpush2.msra.mxu0 0.0
  %246 = vmatprep.subr.mxu0 0.0
  %247 = vmatpush2.msra.mxu0 0.0
  %248 = vmatprep.subr.mxu0 0.0
  %249 = vmatpush2.msra.mxu0 0.0
  %250 = vmatprep.subr.mxu0 0.0
  %251 = vmatpush2.msra.mxu0 0.0
  %252 = vmatprep.subr.mxu0 0.0
  %253 = vmatpush2.msra.mxu0 0.0
  %254 = vmatprep.subr.mxu0 0.0
  %255 = vmatpush2.msra.mxu0 0.0
  %256 = vmatprep.subr.mxu0 0.0
  %257 = vmatpush2.msra.mxu0 0.0
  %258 = vmatprep.subr.mxu0 0.0
  %259 = vmatpush2.msra.mxu0 0.0
  %260 = vmatprep.subr.mxu0 0.0
  %261 = vmatpush2.msra.mxu0 0.0
  %262 = vmatprep.subr.mxu0 0.0
  %263 = vmatpush2.msra.mxu0 0.0
  %264 = vmatprep.subr.mxu0 0.0
  %265 = vmatpush2.msra.mxu0 0.0
  %266 = vmatprep.subr.mxu0 0.0
  %267 = vmatpush2.msra.mxu0 0.0
  %268 = vmatprep.mubr.f32.mxu0 0.0
  %269 = vmatmul.mubr.f32.gmra.mxu0 %v199
  %v270 = vpop.f32.mrf.mxu0
  %v271 = vadd.f32 0.0, %v270
  %v272 = vpop.f32.mrf.mxu0
  %273 = vmatprep.mubr.f32.mxu0 0.0
  %274 = vmatmul.mubr.f32.gmra.mxu0 %v200
  %v275 = vpop.f32.mrf.mxu0
  %v276 = vadd.f32 0.0, %v275
  %v277 = vpop.f32.mrf.mxu0
  %278 = vmatprep.mubr.f32.mxu0 0.0
  %279 = vmatmul.mubr.f32.gmra.mxu0 %v201
  %v280 = vpop.f32.mrf.mxu0
  %v281 = vadd.f32 0.0, %v280
  %v282 = vpop.f32.mrf.mxu0
  %283 = vmatprep.mubr.f32.mxu0 0.0
  %284 = vmatmul.mubr.f32.gmra.mxu0 %v202
  %v285 = vpop.f32.mrf.mxu0
  %v286 = vadd.f32 0.0, %v285
  %v287 = vpop.f32.mrf.mxu0
  %288 = vmatprep.mubr.f32.mxu0 0.0
  %289 = vmatmul.mubr.f32.gmra.mxu0 %v203
  %v290 = vpop.f32.mrf.mxu0
  %v291 = vadd.f32 0.0, %v290
  %v292 = vpop.f32.mrf.mxu0
  %293 = vdwg.mxu0
  %v294 = vmul.f32 %v176, %v271
  %v295 = vmul.f32 %v181, %v276
  %v296 = vmul.f32 %v186, %v281
  %v297 = vmul.f32 %v191, %v286
  %v298 = vmul.f32 %v196, %v291
  %v299 = vadd.f32 %v294, %v295
  %v300 = vadd.f32 %v299, %v296
  %v301 = vadd.f32 %v300, %v297
  %v302 = vadd.f32 %v301, %v298
  %v303 = vrot.slane %v302, 4
  %v304 = vadd.f32 %v302, %v303
  %v305 = vrot.slane %v304, 2
  %v306 = vadd.f32 %v304, %v305
  %v307 = vrot.slane %v306, 1
  %v308 = vadd.f32 %v306, %v307
  %v309 = vxor.u32 %v308, 2147483648
  %v310 = vmul.f32 %v309, 1.442695
  %v311 = vpow.pop %v310
  %v312 = vadd.f32 %v311, 1.0
  %v313 = vrcp.pop %v312
  %v314 = vmul.f32 1.0, %v313
  %315 = vst [vmem:[%s3] sm:$0x1] %v314
  // Predicated region
  $region14: #{mf_forward.1} parent=0 // pred_check
    _
  $region15: #{mf_forward.1} parent=0 // pred_check_branch
    %317 = sbr.rel (0) target = $region17
  $region16: #{mf_forward.1} parent=0 // pred_region
    _
  $region17: #{mf_forward.1} parent=0 // pred_fallthru
    _
  // Predicated region
  $region18: #{mf_forward.1} parent=0 // pred_check
    _
  $region19: #{mf_forward.1} parent=0 // pred_check_branch
    %319 = sbr.rel (0) target = $region21
  $region20: #{mf_forward.1} parent=0 // pred_region
    _
  $region21: #{mf_forward.1} parent=0 // pred_fallthru
    _

</llo_original>
